<compile_context>
chip_gen: v6e
topology: v6e:2x2x1
jax: 0.10.0
libtpu: 0.0.40
codegen_flags: <defaults>
</compile_context>

<pallas_src>
import functools

import jax
import jax.numpy as jnp
import numpy as np
from jax.experimental import pallas as pl
from jax.experimental.pallas import tpu as pltpu

HIDDEN = 64
LANE = 128


def _round_up(x, m):
    return ((x + m - 1) // m) * m


def _policy_net_kernel(x_ref, w1_ref, b1_ref, w2_ref, b2_ref, w3_ref, b3_ref,
                       out_ref, *, compute_dtype):
    """Fused 3-layer MLP on one batch tile: relu(relu(x@W1+b1)@W2+b2)@W3+b3.

    obs tile streams in as f32 and is cast to `compute_dtype` in-kernel;
    weights are already in compute_dtype and resident in VMEM.  Accumulation,
    bias-add and ReLU are f32.  W3/b3 are padded to 128 lanes for the MXU;
    only the first out_dim lanes are stored to HBM.
    """
    x = x_ref[...].astype(compute_dtype)

    h1 = jnp.dot(x, w1_ref[...], preferred_element_type=jnp.float32)
    h1 = jnp.maximum(h1 + b1_ref[...], 0.0)

    h2 = jnp.dot(h1.astype(compute_dtype), w2_ref[...],
                 preferred_element_type=jnp.float32)
    h2 = jnp.maximum(h2 + b2_ref[...], 0.0)

    out = jnp.dot(h2.astype(compute_dtype), w3_ref[...],
                  preferred_element_type=jnp.float32)
    out = out + b3_ref[...]

    out_dim = out_ref.shape[-1]
    out_ref[...] = out[:, :out_dim].astype(out_ref.dtype)


def _choose_tile_b(batch, tile_b_max):
    """Batch tile: multiple of 8 (f32 sublanes); >= 2 grid steps when B > 8
    so v7x's two TensorCores both get work; capped at tile_b_max."""
    tile_b_max = max(8, (int(tile_b_max) // 8) * 8)
    if batch <= 8:
        return 8
    target = _round_up(pl.cdiv(batch, 2), 8)
    return max(8, min(tile_b_max, target))


def policy_net_forward(obs, params, *, compute_dtype=jnp.float32,
                       tile_b_max=2048):
    """Run the PolicyNet forward pass with a single batch-tiled Pallas kernel.

    obs: [B, in_dim] float32
    params: dict with w1 [in_dim,64], b1 [1,64], w2 [64,64], b2 [1,64],
            w3 [64,out_dim], b3 [1,out_dim]
    compute_dtype: dtype fed to the MXU (f32 or bf16); accumulation, bias-add
                   and ReLU are always f32 (bf16 -> intentional small precision
                   loss on the policy logits).
    returns: [B, out_dim] float32
    """
    B, in_dim = obs.shape
    out_dim = params["w3"].shape[1]

    # 128-lane padding of the last layer is for MXU compute only; the HBM
    # output stays narrow at out_dim lanes.
    n_pad = _round_up(max(out_dim, LANE), LANE)

    tile_b = _choose_tile_b(B, tile_b_max)
    grid_b = pl.cdiv(B, tile_b)   # ragged last tile handled by Pallas
                                  # (OOB reads undefined, OOB writes dropped)

    cdt = jnp.dtype(compute_dtype)
    # Weights are tiny (<50 KB): casting/padding them per call is negligible.
    # TODO(synk): cache pre-cast/padded weights if this wrapper sits in a hot loop.
    w1 = params["w1"].astype(cdt)
    w2 = params["w2"].astype(cdt)
    w3 = jnp.pad(params["w3"], ((0, 0), (0, n_pad - out_dim))).astype(cdt)
    b1 = params["b1"].astype(jnp.float32)
    b2 = params["b2"].astype(jnp.float32)
    b3 = jnp.pad(params["b3"], ((0, 0), (0, n_pad - out_dim))).astype(jnp.float32)

    param_bytes = ((w1.size + w2.size + w3.size) * cdt.itemsize
                   + (b1.size + b2.size + b3.size) * 4)
    cost = pl.CostEstimate(
        flops=2 * grid_b * tile_b * (in_dim * HIDDEN + HIDDEN * HIDDEN
                                     + HIDDEN * n_pad),
        bytes_accessed=int(B * in_dim * 4 + B * out_dim * 4 + param_bytes),
        transcendentals=0,
    )

    # Explicit VMEM budget: double-buffered obs/out tiles + resident params
    # + f32 activation slack; clamped to v7x's 64 MiB physical VMEM.
    tile_bytes = 2 * tile_b * (in_dim * 4 + out_dim * 4)
    act_bytes = 4 * tile_b * n_pad * 4
    vmem_limit = int(min(max(tile_bytes + param_bytes + act_bytes + (8 << 20),
                             32 << 20), 64 << 20))

    def resident(shape):
        # Full-array block, constant index_map -> stays in VMEM across grid steps.
        return pl.BlockSpec(shape, lambda i: (0, 0))

    kernel = functools.partial(_policy_net_kernel, compute_dtype=cdt)

    return pl.pallas_call(
        kernel,
        out_shape=jax.ShapeDtypeStruct((B, out_dim), jnp.float32),
        grid=(grid_b,),
        in_specs=[
            pl.BlockSpec((tile_b, in_dim), lambda i: (i, 0)),  # obs tile (f32)
            resident(w1.shape), resident(b1.shape),
            resident(w2.shape), resident(b2.shape),
            resident(w3.shape), resident(b3.shape),
        ],
        out_specs=pl.BlockSpec((tile_b, out_dim), lambda i: (i, 0)),
        compiler_params=pltpu.CompilerParams(
            dimension_semantics=("parallel",),
            vmem_limit_bytes=vmem_limit,
        ),
        cost_estimate=cost,
    )(obs, w1, b1, w2, b2, w3, b3)


def _orthogonal(key, shape, gain):
    """Deterministic orthogonal init (matches torch.nn.init.orthogonal_ semantics)."""
    rows, cols = shape
    flat = jax.random.normal(key, (max(rows, cols), min(rows, cols)),
                             dtype=jnp.float32)
    q, r = jnp.linalg.qr(flat)
    d = jnp.diagonal(r)
    q = q * jnp.where(d >= 0, 1.0, -1.0)   # sign fix robust to d == 0
    if rows < cols:
        q = q.T
    return gain * q[:rows, :cols]


def init_policy_net_params(key, in_dim, out_dim):
    k1, k2, k3 = jax.random.split(key, 3)
    std = float(np.sqrt(2.0))
    # Stored as [fan_in, fan_out] for direct x @ W in the kernel.
    w1 = _orthogonal(k1, (HIDDEN, in_dim), std).T          # [in_dim, 64]
    w2 = _orthogonal(k2, (HIDDEN, HIDDEN), std).T          # [64, 64]
    w3 = _orthogonal(k3, (out_dim, HIDDEN), 0.01).T        # [64, out_dim]
    return {
        "w1": w1, "b1": jnp.zeros((1, HIDDEN), jnp.float32),
        "w2": w2, "b2": jnp.zeros((1, HIDDEN), jnp.float32),
        "w3": w3, "b3": jnp.zeros((1, out_dim), jnp.float32),
    }


def policy_net_reference(obs, params):
    h1 = jnp.maximum(obs @ params["w1"] + params["b1"], 0.0)
    h2 = jnp.maximum(h1 @ params["w2"] + params["b2"], 0.0)
    return h2 @ params["w3"] + params["b3"]


if __name__ == "__main__":
    key = jax.random.PRNGKey(0)
    k_obs, k_obs2, k_par = jax.random.split(key, 3)

    in_dim, out_dim = 16, 4
    params = init_policy_net_params(k_par, in_dim, out_dim)

    # Small-batch case (single tile).
    batch = 8
    obs = jax.random.normal(k_obs, (batch, in_dim), dtype=jnp.float32)
    out = jax.block_until_ready(policy_net_forward(obs, params))
    ref = policy_net_reference(obs, params)
    np.testing.assert_allclose(np.asarray(out), np.asarray(ref),
                               rtol=1e-5, atol=1e-5)
    assert out.shape == (batch, out_dim)

    # Multi-tile case: B=1000, tile_b_max=256 -> grid of 4 with a ragged
    # last tile (exercises OOB read/write masking, no wrapper-side padding).
    big_batch = 1000
    obs_big = jax.random.normal(k_obs2, (big_batch, in_dim), dtype=jnp.float32)
    out_big = jax.block_until_ready(
        policy_net_forward(obs_big, params, tile_b_max=256))
    ref_big = policy_net_reference(obs_big, params)
    np.testing.assert_allclose(np.asarray(out_big), np.asarray(ref_big),
                               rtol=1e-5, atol=1e-5)
    assert out_big.shape == (big_batch, out_dim)

    # Default tile selection (tile_b ~= B/2 -> grid of 2 for v7x megacore).
    out_big2 = jax.block_until_ready(policy_net_forward(obs_big, params))
    np.testing.assert_allclose(np.asarray(out_big2), np.asarray(ref_big),
                               rtol=1e-5, atol=1e-5)

    # bf16 MXU path (cast happens in-kernel; f32 accumulation), loose tolerance.
    out_bf16 = jax.block_until_ready(
        policy_net_forward(obs_big, params, compute_dtype=jnp.bfloat16,
                           tile_b_max=256))
    np.testing.assert_allclose(np.asarray(out_bf16), np.asarray(ref_big),
                               rtol=5e-2, atol=5e-2)

    print("KERNEL_OK")
</pallas_src>

<mosaic_0001>
module attributes {stable_mosaic.version = 11 : i64} {
  func.func @_policy_net_kernel(%arg0: i32, %arg1: memref<8x16xf32, #tpu.memory_space<vmem>>, %arg2: memref<16x64xf32, #tpu.memory_space<vmem>>, %arg3: memref<1x64xf32, #tpu.memory_space<vmem>>, %arg4: memref<64x64xf32, #tpu.memory_space<vmem>>, %arg5: memref<1x64xf32, #tpu.memory_space<vmem>>, %arg6: memref<64x128xf32, #tpu.memory_space<vmem>>, %arg7: memref<1x128xf32, #tpu.memory_space<vmem>>, %arg8: memref<8x4xf32, #tpu.memory_space<vmem>>) attributes {dimension_semantics = [#tpu.dimension_semantics<parallel>], iteration_bounds = array<i64: 1>, scalar_prefetch = 0 : i64, scratch_operands = 0 : i64, tpu.core_type = #tpu.core_type<tc>, window_params = [{transform_indices = @transform_0, window_bounds = array<i64: 8, 16>}, {pipeline_mode = #tpu.pipeline_mode<synchronous>, transform_indices = @transform_1, window_bounds = array<i64: 16, 64>}, {pipeline_mode = #tpu.pipeline_mode<synchronous>, transform_indices = @transform_2, window_bounds = array<i64: 1, 64>}, {pipeline_mode = #tpu.pipeline_mode<synchronous>, transform_indices = @transform_3, window_bounds = array<i64: 64, 64>}, {pipeline_mode = #tpu.pipeline_mode<synchronous>, transform_indices = @transform_4, window_bounds = array<i64: 1, 64>}, {pipeline_mode = #tpu.pipeline_mode<synchronous>, transform_indices = @transform_5, window_bounds = array<i64: 64, 128>}, {pipeline_mode = #tpu.pipeline_mode<synchronous>, transform_indices = @transform_6, window_bounds = array<i64: 1, 128>}, {transform_indices = @transform_7, window_bounds = array<i64: 8, 4>}]} {
    %c0 = arith.constant 0 : index
    %c0_0 = arith.constant 0 : index
    %0 = vector.load %arg1[%c0, %c0_0] : memref<8x16xf32, #tpu.memory_space<vmem>>, vector<8x16xf32>
    %c0_1 = arith.constant 0 : index
    %c0_2 = arith.constant 0 : index
    %1 = vector.load %arg2[%c0_1, %c0_2] : memref<16x64xf32, #tpu.memory_space<vmem>>, vector<16x64xf32>
    %cst = arith.constant dense<0.000000e+00> : vector<8x64xf32>
    %2 = tpu.matmul %0, %1, %cst {dimension_numbers = #tpu.dot_dimension_numbers<[1], [0], [0], [1], [0, 0, 1, 1], [], []>} : vector<8x16xf32>, vector<16x64xf32>, vector<8x64xf32> -> vector<8x64xf32>
    %c0_3 = arith.constant 0 : index
    %c0_4 = arith.constant 0 : index
    %3 = vector.load %arg3[%c0_3, %c0_4] : memref<1x64xf32, #tpu.memory_space<vmem>>, vector<1x64xf32>
    %4 = vector.broadcast %3 : vector<1x64xf32> to vector<8x64xf32>
    %5 = arith.addf %2, %4 : vector<8x64xf32>
    %cst_5 = arith.constant 0.000000e+00 : f32
    %6 = vector.broadcast %cst_5 : f32 to vector<8x64xf32>
    %7 = arith.maximumf %5, %6 : vector<8x64xf32>
    %c0_6 = arith.constant 0 : index
    %c0_7 = arith.constant 0 : index
    %8 = vector.load %arg4[%c0_6, %c0_7] : memref<64x64xf32, #tpu.memory_space<vmem>>, vector<64x64xf32>
    %cst_8 = arith.constant dense<0.000000e+00> : vector<8x64xf32>
    %9 = tpu.matmul %7, %8, %cst_8 {dimension_numbers = #tpu.dot_dimension_numbers<[1], [0], [0], [1], [0, 0, 1, 1], [], []>} : vector<8x64xf32>, vector<64x64xf32>, vector<8x64xf32> -> vector<8x64xf32>
    %c0_9 = arith.constant 0 : index
    %c0_10 = arith.constant 0 : index
    %10 = vector.load %arg5[%c0_9, %c0_10] : memref<1x64xf32, #tpu.memory_space<vmem>>, vector<1x64xf32>
    %11 = vector.broadcast %10 : vector<1x64xf32> to vector<8x64xf32>
    %12 = arith.addf %9, %11 : vector<8x64xf32>
    %cst_11 = arith.constant 0.000000e+00 : f32
    %13 = vector.broadcast %cst_11 : f32 to vector<8x64xf32>
    %14 = arith.maximumf %12, %13 : vector<8x64xf32>
    %c0_12 = arith.constant 0 : index
    %c0_13 = arith.constant 0 : index
    %15 = vector.load %arg6[%c0_12, %c0_13] : memref<64x128xf32, #tpu.memory_space<vmem>>, vector<64x128xf32>
    %cst_14 = arith.constant dense<0.000000e+00> : vector<8x128xf32>
    %16 = tpu.matmul %14, %15, %cst_14 {dimension_numbers = #tpu.dot_dimension_numbers<[1], [0], [0], [1], [0, 0, 1, 1], [], []>} : vector<8x64xf32>, vector<64x128xf32>, vector<8x128xf32> -> vector<8x128xf32>
    %c0_15 = arith.constant 0 : index
    %c0_16 = arith.constant 0 : index
    %17 = vector.load %arg7[%c0_15, %c0_16] : memref<1x128xf32, #tpu.memory_space<vmem>>, vector<1x128xf32>
    %18 = vector.broadcast %17 : vector<1x128xf32> to vector<8x128xf32>
    %19 = arith.addf %16, %18 : vector<8x128xf32>
    %20 = vector.extract_strided_slice %19 {offsets = [0, 0], sizes = [8, 4], strides = [1, 1]} : vector<8x128xf32> to vector<8x4xf32>
    %c0_17 = arith.constant 0 : index
    %c0_18 = arith.constant 0 : index
    %21 = vector.load %arg8[%c0_17, %c0_18] : memref<8x4xf32, #tpu.memory_space<vmem>>, vector<8x4xf32>
    tpu.vector_store %arg8[%c0_17, %c0_18], %20 {strides = array<i32>} : memref<8x4xf32, #tpu.memory_space<vmem>>, vector<8x4xf32>,
    return
  }
  func.func @transform_0(%arg0: i32) -> (i32, i32) {
    %c0_i32 = arith.constant 0 : i32
    %c0_i32_0 = arith.constant 0 : i32
    return %arg0, %c0_i32 : i32, i32
  }
  func.func @transform_1(%arg0: i32) -> (i32, i32) {
    %c0_i32 = arith.constant 0 : i32
    %c0_i32_0 = arith.constant 0 : i32
    %c0_i32_1 = arith.constant 0 : i32
    return %c0_i32, %c0_i32_0 : i32, i32
  }
  func.func @transform_2(%arg0: i32) -> (i32, i32) {
    %c0_i32 = arith.constant 0 : i32
    %c0_i32_0 = arith.constant 0 : i32
    %c0_i32_1 = arith.constant 0 : i32
    return %c0_i32, %c0_i32_0 : i32, i32
  }
  func.func @transform_3(%arg0: i32) -> (i32, i32) {
    %c0_i32 = arith.constant 0 : i32
    %c0_i32_0 = arith.constant 0 : i32
    %c0_i32_1 = arith.constant 0 : i32
    return %c0_i32, %c0_i32_0 : i32, i32
  }
  func.func @transform_4(%arg0: i32) -> (i32, i32) {
    %c0_i32 = arith.constant 0 : i32
    %c0_i32_0 = arith.constant 0 : i32
    %c0_i32_1 = arith.constant 0 : i32
    return %c0_i32, %c0_i32_0 : i32, i32
  }
  func.func @transform_5(%arg0: i32) -> (i32, i32) {
    %c0_i32 = arith.constant 0 : i32
    %c0_i32_0 = arith.constant 0 : i32
    %c0_i32_1 = arith.constant 0 : i32
    return %c0_i32, %c0_i32_0 : i32, i32
  }
  func.func @transform_6(%arg0: i32) -> (i32, i32) {
    %c0_i32 = arith.constant 0 : i32
    %c0_i32_0 = arith.constant 0 : i32
    %c0_i32_1 = arith.constant 0 : i32
    return %c0_i32, %c0_i32_0 : i32, i32
  }
  func.func @transform_7(%arg0: i32) -> (i32, i32) {
    %c0_i32 = arith.constant 0 : i32
    %c0_i32_0 = arith.constant 0 : i32
    return %arg0, %c0_i32 : i32, i32
  }
}

</mosaic_0001>

<llo_original>
// kernel: tpu_custom_call.1
$region0: #{tpu_custom_call.1}
  #allocation0 [shape = 'u32[]', space=smem, size = 0x4, offset = 0x4, fixed_abs, tag = 'smem constant byte address 0x4 - core index']
  #allocation1 [shape = 'u32[144,128]{1,0:T(1,128)}', space=vmem, size = 0x12000, scoped, tag = 'internal scratch']
  %s0 = inlined_call_operand.hbm [shape: f32[8,16], index: 0, kind: input, shape index: {}]
  %s1 = inlined_call_operand.hbm [shape: f32[16,64], index: 1, kind: input, shape index: {}]
  %s2 = inlined_call_operand.vmem [shape: f32[1,64], index: 2, kind: input, shape index: {}]
  %s3 = inlined_call_operand.hbm [shape: f32[64,64], index: 3, kind: input, shape index: {}]
  %s4 = inlined_call_operand.vmem [shape: f32[1,64], index: 4, kind: input, shape index: {}]
  %s5 = inlined_call_operand.hbm [shape: f32[64,128], index: 5, kind: input, shape index: {}]
  %s6 = inlined_call_operand.vmem [shape: f32[1,128], index: 6, kind: input, shape index: {}]
  %s7 = inlined_call_operand.vmem [shape: f32[8,4], index: 7, kind: output, shape index: {}]
  %s8 = sld [smem:[#allocation0]]
  $region54: #{tpu_custom_call.1} parent=0
    _
  %s10 = ssub.s32 1, %s8
  %s11 = scalar_select 0, %s10, %s8
  $region1: #{tpu_custom_call.1} parent=0
    #allocation2 [shape = 'u8[4096]{0}', space=vmem, size = 0x1000, scoped, tag = 'input window, operand 0, single buffered']
    #allocation3 [shape = 's32[1]{0}', space=sflag, size = 0x4, scoped, tag = 'scoped memory for tpu_custom_call.1']
    #allocation4 [shape = 'u8[8192]{0}', space=vmem, size = 0x2000, scoped, tag = 'input window, operand 1, single buffered']
    #allocation5 [shape = 's32[1]{0}', space=sflag, size = 0x4, scoped, tag = 'scoped memory for tpu_custom_call.1']
    #allocation6 [shape = 'u8[32768]{0}', space=vmem, size = 0x8000, scoped, tag = 'input window, operand 3, single buffered']
    #allocation7 [shape = 'u8[32768]{0}', space=vmem, size = 0x8000, scoped, tag = 'input window, operand 5, single buffered']
    #allocation8 [shape = 's32[1]{0}', space=sflag, size = 0x4, scoped, tag = 'scoped memory for tpu_custom_call.1']
    %12 = vsyncpa [#allocation3], 0
    %13 = vsyncpa [#allocation5], 0
    %14 = vsyncpa [#allocation8], 0
    // Predicated region
    $region2: #{tpu_custom_call.1} parent=1 // pred_check
      _
    $region3: #{tpu_custom_call.1} parent=1 // pred_check_branch
      %16 = sbr.rel (0) target = $region5
    $region4: #{tpu_custom_call.1} parent=1 // pred_region
      %s18 = ssub.s32 128, 128
      %19 = vsyncadd [#allocation3], %s18
      %s21 = sshll.u32 [#allocation2], 4
      %s22 = int_to_ptr.vmem [resolvable:$true] %s21
      %24 = dma.hbm_to_vmem [thread:$0]  %s0, 128, %s22, [#allocation3]
    $region5: #{tpu_custom_call.1} parent=1 // pred_fallthru
      _
    // Predicated region
    $region6: #{tpu_custom_call.1} parent=1 // pred_check
      _
    $region7: #{tpu_custom_call.1} parent=1 // pred_check_branch
      %26 = sbr.rel (0) target = $region9
    $region8: #{tpu_custom_call.1} parent=1 // pred_region
      %s28 = ssub.s32 256, 256
      %29 = vsyncadd [#allocation5], %s28
      %s30 = sshll.u32 [#allocation4], 4
      %s31 = int_to_ptr.vmem [resolvable:$true] %s30
      %36 = dma.hbm_to_vmem [thread:$0]  %s1, 256, %s31, [#allocation5], 128, 128, 8
    $region9: #{tpu_custom_call.1} parent=1 // pred_fallthru
      _
    // Predicated region
    $region10: #{tpu_custom_call.1} parent=1 // pred_check
      _
    $region11: #{tpu_custom_call.1} parent=1 // pred_check_branch
      %38 = sbr.rel (0) target = $region13
    $region12: #{tpu_custom_call.1} parent=1 // pred_region
      _
    $region13: #{tpu_custom_call.1} parent=1 // pred_fallthru
      _
    // Predicated region
    $region14: #{tpu_custom_call.1} parent=1 // pred_check
      _
    $region15: #{tpu_custom_call.1} parent=1 // pred_check_branch
      %40 = sbr.rel (0) target = $region17
    $region16: #{tpu_custom_call.1} parent=1 // pred_region
      %s42 = ssub.s32 1024, 1024
      %43 = vsyncadd [#allocation5], %s42
      %s44 = sshll.u32 [#allocation6], 4
      %s45 = int_to_ptr.vmem [resolvable:$true] %s44
      %50 = dma.hbm_to_vmem [thread:$0]  %s3, 1024, %s45, [#allocation5], 128, 128, 8
    $region17: #{tpu_custom_call.1} parent=1 // pred_fallthru
      _
    // Predicated region
    $region18: #{tpu_custom_call.1} parent=1 // pred_check
      _
    $region19: #{tpu_custom_call.1} parent=1 // pred_check_branch
      %52 = sbr.rel (0) target = $region21
    $region20: #{tpu_custom_call.1} parent=1 // pred_region
      _
    $region21: #{tpu_custom_call.1} parent=1 // pred_fallthru
      _
    // Predicated region
    $region22: #{tpu_custom_call.1} parent=1 // pred_check
      _
    $region23: #{tpu_custom_call.1} parent=1 // pred_check_branch
      %54 = sbr.rel (0) target = $region25
    $region24: #{tpu_custom_call.1} parent=1 // pred_region
      %s56 = ssub.s32 1024, 1024
      %57 = vsyncadd [#allocation8], %s56
      %s58 = sshll.u32 [#allocation7], 4
      %s59 = int_to_ptr.vmem [resolvable:$true] %s58
      %64 = dma.hbm_to_vmem [thread:$0]  %s5, 1024, %s59, [#allocation8], 128, 128, 8
    $region25: #{tpu_custom_call.1} parent=1 // pred_fallthru
      _
    // Predicated region
    $region26: #{tpu_custom_call.1} parent=1 // pred_check
      _
    $region27: #{tpu_custom_call.1} parent=1 // pred_check_branch
      %66 = sbr.rel (0) target = $region29
    $region28: #{tpu_custom_call.1} parent=1 // pred_region
      _
    $region29: #{tpu_custom_call.1} parent=1 // pred_fallthru
      _
    // Predicated region
    $region30: #{tpu_custom_call.1} parent=1 // pred_check
      _
    $region31: #{tpu_custom_call.1} parent=1 // pred_check_branch
      %68 = sbr.rel (0) target = $region33
    $region32: #{tpu_custom_call.1} parent=1 // pred_region
      %69 = dma.done [#allocation3], 128
    $region33: #{tpu_custom_call.1} parent=1 // pred_fallthru
      _
    // Predicated region
    $region34: #{tpu_custom_call.1} parent=1 // pred_check
      _
    $region35: #{tpu_custom_call.1} parent=1 // pred_check_branch
      %71 = sbr.rel (0) target = $region37
    $region36: #{tpu_custom_call.1} parent=1 // pred_region
      %72 = dma.done [#allocation5], 256
    $region37: #{tpu_custom_call.1} parent=1 // pred_fallthru
      _
    // Predicated region
    $region38: #{tpu_custom_call.1} parent=1 // pred_check
      _
    $region39: #{tpu_custom_call.1} parent=1 // pred_check_branch
      %74 = sbr.rel (0) target = $region41
    $region40: #{tpu_custom_call.1} parent=1 // pred_region
      %75 = dma.done [#allocation5], 1024
    $region41: #{tpu_custom_call.1} parent=1 // pred_fallthru
      _
    // Predicated region
    $region42: #{tpu_custom_call.1} parent=1 // pred_check
      _
    $region43: #{tpu_custom_call.1} parent=1 // pred_check_branch
      %77 = sbr.rel (0) target = $region45
    $region44: #{tpu_custom_call.1} parent=1 // pred_region
      %78 = dma.done [#allocation8], 1024
    $region45: #{tpu_custom_call.1} parent=1 // pred_fallthru
      _
    %v79 = vld [vmem:[#allocation2] sm:$0xff]
    %v80 = vld [vmem:[#allocation4] sm:$0xff]
    %v81 = vld [vmem:[#allocation4 + $0x8] sm:$0xff]
    %v82 = vld [vmem:[%s2] sm:$0x1]
    %v84 = vlaneseq
    %v85 = vshrl.u32 %v84, 7
    %v86 = vsub.s32 0, %v85
    %v87 = vrot.slane %v82, %v86
    %vm89 = vcmask 130048
    %v91 = vsel %vm89, %v79, 0
    %93 = vmatprep.subr.mxu0 0.0
    %94 = vmatpush1.msra.mxu0 0.0
    %95 = vmatprep.subr.mxu0 0.0
    %96 = vmatpush1.msra.mxu0 0.0
    %97 = vmatprep.subr.mxu0 0.0
    %98 = vmatpush1.msra.mxu0 0.0
    %99 = vmatprep.subr.mxu0 0.0
    %100 = vmatpush1.msra.mxu0 0.0
    %101 = vmatprep.subr.mxu0 0.0
    %102 = vmatpush1.msra.mxu0 0.0
    %103 = vmatprep.subr.mxu0 0.0
    %104 = vmatpush1.msra.mxu0 0.0
    %105 = vmatprep.subr.mxu0 0.0
    %106 = vmatpush1.msra.mxu0 0.0
    %107 = vmatprep.subr.mxu0 0.0
    %108 = vmatpush1.msra.mxu0 0.0
    %109 = vmatprep.subr.mxu0 0.0
    %110 = vmatpush1.msra.mxu0 0.0
    %111 = vmatprep.subr.mxu0 0.0
    %112 = vmatpush1.msra.mxu0 0.0
    %113 = vmatprep.subr.mxu0 0.0
    %114 = vmatpush1.msra.mxu0 0.0
    %115 = vmatprep.subr.mxu0 0.0
    %116 = vmatpush1.msra.mxu0 0.0
    %117 = vmatprep.subr.mxu0 0.0
    %118 = vmatpush1.msra.mxu0 0.0
    %119 = vmatprep.subr.mxu0 0.0
    %120 = vmatpush1.msra.mxu0 0.0
    %121 = vmatprep.subr.mxu0 0.0
    %122 = vmatpush1.msra.mxu0 %v81
    %123 = vmatprep.subr.mxu0 0.0
    %124 = vmatpush1.msra.mxu0 %v80
    %125 = vmatprep.subr.mxu0 0.0
    %126 = vmatpush2.msra.mxu0 0.0
    %127 = vmatprep.subr.mxu0 0.0
    %128 = vmatpush2.msra.mxu0 0.0
    %129 = vmatprep.subr.mxu0 0.0
    %130 = vmatpush2.msra.mxu0 0.0
    %131 = vmatprep.subr.mxu0 0.0
    %132 = vmatpush2.msra.mxu0 0.0
    %133 = vmatprep.subr.mxu0 0.0
    %134 = vmatpush2.msra.mxu0 0.0
    %135 = vmatprep.subr.mxu0 0.0
    %136 = vmatpush2.msra.mxu0 0.0
    %137 = vmatprep.subr.mxu0 0.0
    %138 = vmatpush2.msra.mxu0 0.0
    %139 = vmatprep.subr.mxu0 0.0
    %140 = vmatpush2.msra.mxu0 0.0
    %141 = vmatprep.subr.mxu0 0.0
    %142 = vmatpush2.msra.mxu0 0.0
    %143 = vmatprep.subr.mxu0 0.0
    %144 = vmatpush2.msra.mxu0 0.0
    %145 = vmatprep.subr.mxu0 0.0
    %146 = vmatpush2.msra.mxu0 0.0
    %147 = vmatprep.subr.mxu0 0.0
    %148 = vmatpush2.msra.mxu0 0.0
    %149 = vmatprep.subr.mxu0 0.0
    %150 = vmatpush2.msra.mxu0 0.0
    %151 = vmatprep.subr.mxu0 0.0
    %152 = vmatpush2.msra.mxu0 0.0
    %153 = vmatprep.subr.mxu0 0.0
    %154 = vmatpush2.msra.mxu0 0.0
    %155 = vmatprep.subr.mxu0 0.0
    %156 = vmatpush2.msra.mxu0 0.0
    %157 = vmatprep.mubr.f32.mxu0 0.0
    %158 = vmatmul.mubr.f32.gmra.mxu0 %v91
    %v159 = vpop.f32.mrf.mxu0
    %v160 = vadd.f32 %v87, %v159
    %v161 = vpop.f32.mrf.mxu0
    %162 = vdwg.mxu0
    %v163 = vmax.f32 %v160, 0.0
    %v164 = vld [vmem:[#allocation6] sm:$0xff]
    %v165 = vld [vmem:[#allocation6 + $0x8] sm:$0xff]
    %v166 = vld [vmem:[#allocation6 + $0x10] sm:$0xff]
    %v167 = vld [vmem:[#allocation6 + $0x18] sm:$0xff]
    %v168 = vld [vmem:[#allocation6 + $0x20] sm:$0xff]
    %v169 = vld [vmem:[#allocation6 + $0x28] sm:$0xff]
    %v170 = vld [vmem:[#allocation6 + $0x30] sm:$0xff]
    %v171 = vld [vmem:[#allocation6 + $0x38] sm:$0xff]
    %v172 = vld [vmem:[%s4] sm:$0x1]
    %v174 = vlaneseq
    %v175 = vshrl.u32 %v174, 7
    %v176 = vsub.s32 0, %v175
    %v177 = vrot.slane %v172, %v176
    %vm179 = vcmask 523264
    %v181 = vsel %vm179, %v163, 0
    %183 = vmatprep.subr.mxu0 0.0
    %184 = vmatpush1.msra.mxu0 0.0
    %185 = vmatprep.subr.mxu0 0.0
    %186 = vmatpush1.msra.mxu0 0.0
    %187 = vmatprep.subr.mxu0 0.0
    %188 = vmatpush1.msra.mxu0 0.0
    %189 = vmatprep.subr.mxu0 0.0
    %190 = vmatpush1.msra.mxu0 0.0
    %191 = vmatprep.subr.mxu0 0.0
    %192 = vmatpush1.msra.mxu0 0.0
    %193 = vmatprep.subr.mxu0 0.0
    %194 = vmatpush1.msra.mxu0 0.0
    %195 = vmatprep.subr.mxu0 0.0
    %196 = vmatpush1.msra.mxu0 0.0
    %197 = vmatprep.subr.mxu0 0.0
    %198 = vmatpush1.msra.mxu0 0.0
    %199 = vmatprep.subr.mxu0 0.0
    %200 = vmatpush1.msra.mxu0 %v171
    %201 = vmatprep.subr.mxu0 0.0
    %202 = vmatpush1.msra.mxu0 %v170
    %203 = vmatprep.subr.mxu0 0.0
    %204 = vmatpush1.msra.mxu0 %v169
    %205 = vmatprep.subr.mxu0 0.0
    %206 = vmatpush1.msra.mxu0 %v168
    %207 = vmatprep.subr.mxu0 0.0
    %208 = vmatpush1.msra.mxu0 %v167
    %209 = vmatprep.subr.mxu0 0.0
    %210 = vmatpush1.msra.mxu0 %v166
    %211 = vmatprep.subr.mxu0 0.0
    %212 = vmatpush1.msra.mxu0 %v165
    %213 = vmatprep.subr.mxu0 0.0
    %214 = vmatpush1.msra.mxu0 %v164
    %215 = vmatprep.subr.mxu0 0.0
    %216 = vmatpush2.msra.mxu0 0.0
    %217 = vmatprep.subr.mxu0 0.0
    %218 = vmatpush2.msra.mxu0 0.0
    %219 = vmatprep.subr.mxu0 0.0
    %220 = vmatpush2.msra.mxu0 0.0
    %221 = vmatprep.subr.mxu0 0.0
    %222 = vmatpush2.msra.mxu0 0.0
    %223 = vmatprep.subr.mxu0 0.0
    %224 = vmatpush2.msra.mxu0 0.0
    %225 = vmatprep.subr.mxu0 0.0
    %226 = vmatpush2.msra.mxu0 0.0
    %227 = vmatprep.subr.mxu0 0.0
    %228 = vmatpush2.msra.mxu0 0.0
    %229 = vmatprep.subr.mxu0 0.0
    %230 = vmatpush2.msra.mxu0 0.0
    %231 = vmatprep.subr.mxu0 0.0
    %232 = vmatpush2.msra.mxu0 0.0
    %233 = vmatprep.subr.mxu0 0.0
    %234 = vmatpush2.msra.mxu0 0.0
    %235 = vmatprep.subr.mxu0 0.0
    %236 = vmatpush2.msra.mxu0 0.0
    %237 = vmatprep.subr.mxu0 0.0
    %238 = vmatpush2.msra.mxu0 0.0
    %239 = vmatprep.subr.mxu0 0.0
    %240 = vmatpush2.msra.mxu0 0.0
    %241 = vmatprep.subr.mxu0 0.0
    %242 = vmatpush2.msra.mxu0 0.0
    %243 = vmatprep.subr.mxu0 0.0
    %244 = vmatpush2.msra.mxu0 0.0
    %245 = vmatprep.subr.mxu0 0.0
    %246 = vmatpush2.msra.mxu0 0.0
    %247 = vmatprep.mubr.f32.mxu0 0.0
    %248 = vmatmul.mubr.f32.gmra.mxu0 %v181
    %v249 = vpop.f32.mrf.mxu0
    %v250 = vadd.f32 %v177, %v249
    %v251 = vpop.f32.mrf.mxu0
    %252 = vdwg.mxu0
    %v253 = vmax.f32 %v250, 0.0
    %v254 = vld [vmem:[#allocation7] sm:$0xff]
    %v255 = vld [vmem:[#allocation7 + $0x8] sm:$0xff]
    %v256 = vld [vmem:[#allocation7 + $0x10] sm:$0xff]
    %v257 = vld [vmem:[#allocation7 + $0x18] sm:$0xff]
    %v258 = vld [vmem:[#allocation7 + $0x20] sm:$0xff]
    %v259 = vld [vmem:[#allocation7 + $0x28] sm:$0xff]
    %v260 = vld [vmem:[#allocation7 + $0x30] sm:$0xff]
    %v261 = vld [vmem:[#allocation7 + $0x38] sm:$0xff]
    %v262 = vld [vmem:[%s6] sm:$0x1]
    %v264 = vlaneseq
    %v265 = vshrl.u32 %v264, 7
    %v266 = vsub.s32 0, %v265
    %v267 = vrot.slane %v262, %v266
    %v270 = vsel %vm179, %v253, 0
    %272 = vmatprep.subr.mxu0 0.0
    %273 = vmatpush1.msra.mxu0 0.0
    %274 = vmatprep.subr.mxu0 0.0
    %275 = vmatpush1.msra.mxu0 0.0
    %276 = vmatprep.subr.mxu0 0.0
    %277 = vmatpush1.msra.mxu0 0.0
    %278 = vmatprep.subr.mxu0 0.0
    %279 = vmatpush1.msra.mxu0 0.0
    %280 = vmatprep.subr.mxu0 0.0
    %281 = vmatpush1.msra.mxu0 0.0
    %282 = vmatprep.subr.mxu0 0.0
    %283 = vmatpush1.msra.mxu0 0.0
    %284 = vmatprep.subr.mxu0 0.0
    %285 = vmatpush1.msra.mxu0 0.0
    %286 = vmatprep.subr.mxu0 0.0
    %287 = vmatpush1.msra.mxu0 0.0
    %288 = vmatprep.subr.mxu0 0.0
    %289 = vmatpush1.msra.mxu0 %v261
    %290 = vmatprep.subr.mxu0 0.0
    %291 = vmatpush1.msra.mxu0 %v260
    %292 = vmatprep.subr.mxu0 0.0
    %293 = vmatpush1.msra.mxu0 %v259
    %294 = vmatprep.subr.mxu0 0.0
    %295 = vmatpush1.msra.mxu0 %v258
    %296 = vmatprep.subr.mxu0 0.0
    %297 = vmatpush1.msra.mxu0 %v257
    %298 = vmatprep.subr.mxu0 0.0
    %299 = vmatpush1.msra.mxu0 %v256
    %300 = vmatprep.subr.mxu0 0.0
    %301 = vmatpush1.msra.mxu0 %v255
    %302 = vmatprep.subr.mxu0 0.0
    %303 = vmatpush1.msra.mxu0 %v254
    %304 = vmatprep.subr.mxu0 0.0
    %305 = vmatpush2.msra.mxu0 0.0
    %306 = vmatprep.subr.mxu0 0.0
    %307 = vmatpush2.msra.mxu0 0.0
    %308 = vmatprep.subr.mxu0 0.0
    %309 = vmatpush2.msra.mxu0 0.0
    %310 = vmatprep.subr.mxu0 0.0
    %311 = vmatpush2.msra.mxu0 0.0
    %312 = vmatprep.subr.mxu0 0.0
    %313 = vmatpush2.msra.mxu0 0.0
    %314 = vmatprep.subr.mxu0 0.0
    %315 = vmatpush2.msra.mxu0 0.0
    %316 = vmatprep.subr.mxu0 0.0
    %317 = vmatpush2.msra.mxu0 0.0
    %318 = vmatprep.subr.mxu0 0.0
    %319 = vmatpush2.msra.mxu0 0.0
    %320 = vmatprep.subr.mxu0 0.0
    %321 = vmatpush2.msra.mxu0 0.0
    %322 = vmatprep.subr.mxu0 0.0
    %323 = vmatpush2.msra.mxu0 0.0
    %324 = vmatprep.subr.mxu0 0.0
    %325 = vmatpush2.msra.mxu0 0.0
    %326 = vmatprep.subr.mxu0 0.0
    %327 = vmatpush2.msra.mxu0 0.0
    %328 = vmatprep.subr.mxu0 0.0
    %329 = vmatpush2.msra.mxu0 0.0
    %330 = vmatprep.subr.mxu0 0.0
    %331 = vmatpush2.msra.mxu0 0.0
    %332 = vmatprep.subr.mxu0 0.0
    %333 = vmatpush2.msra.mxu0 0.0
    %334 = vmatprep.subr.mxu0 0.0
    %335 = vmatpush2.msra.mxu0 0.0
    %336 = vmatprep.mubr.f32.mxu0 0.0
    %337 = vmatmul.mubr.f32.gmra.mxu0 %v270
    %v338 = vpop.f32.mrf.mxu0
    %v339 = vadd.f32 %v267, %v338
    %v340 = vpop.f32.mrf.mxu0
    %341 = vdwg.mxu0
    %vm342 = vcmask 31744
    %343 = vst.msk [vmem:[%s7] sm:$0xff] %vm342, %v339
    // Predicated region
    $region46: #{tpu_custom_call.1} parent=1 // pred_check
      _
    $region47: #{tpu_custom_call.1} parent=1 // pred_check_branch
      %345 = sbr.rel (0) target = $region49
    $region48: #{tpu_custom_call.1} parent=1 // pred_region
      _
    $region49: #{tpu_custom_call.1} parent=1 // pred_fallthru
      _
    // Predicated region
    $region50: #{tpu_custom_call.1} parent=1 // pred_check
      _
    $region51: #{tpu_custom_call.1} parent=1 // pred_check_branch
      %347 = sbr.rel (0) target = $region53
    $region52: #{tpu_custom_call.1} parent=1 // pred_region
      _
    $region53: #{tpu_custom_call.1} parent=1 // pred_fallthru
      _
    %348 = vsyncpa [#allocation3], 1
    %349 = vsyncpa [#allocation5], 1
    %350 = vsyncpa [#allocation8], 1

</llo_original>
